<compile_context>
chip_gen: v7x
topology: tpu7x:2x2x1
jax: 0.10.0
libtpu: 0.0.40
codegen_flags: <defaults>
</compile_context>

<pallas_src>
import numpy as np
import jax
import jax.numpy as jnp
from jax import lax
from jax.experimental import pallas as pl
from jax.experimental.pallas import tpu as pltpu

numberOfGeometricDimensions = 2
useGeometricHashingAMANN = False
useGeometricHashingProbabilisticKeypoints = False
debugGeometricHashingHardcoded = False
xAxis = 0
yAxis = 1
GEOMETRIC_HASHING_NUM_KEYPOINTS = numberOfGeometricDimensions + 1  # 3


def _nan_to_zero(x):
    return jnp.where(x != x, jnp.zeros_like(x), x)


def _tpu_vmem_capacity_bytes():
    """Per-TensorCore VMEM capacity; conservative v7x fallback if the query fails."""
    try:
        info = pltpu.get_tpu_info()
        cap = int(getattr(info, "vmem_capacity_bytes"))
        if cap > 0:
            return cap
    except Exception:
        pass
    return 64 * 1024 * 1024


def _precompute_batch_invariant(pos_embeddings):
    """Batch-invariant preprocessing, hoisted out of the Pallas grid loop.

    Returns:
      pe_norm   : (S, 2)  normaliseInputs0to1(posEmbeddings, dim=0)
      pe_norm_T : (2, S)  same, transposed (lane-dense gather source used in-kernel)
      dots_prox : (S, S)  cosine-proximity matrix einsum('ik,jk->ij') of row-normalised rows
    """
    pe = pos_embeddings.astype(jnp.float32)
    # TODO(synk): ATORpt_operations.normaliseInputs0to1 is not provided; assumed
    #             A / A.max(dim, keepdim=True) with nan -> 0 (positive pixel coordinates).
    col_max = jnp.max(pe, axis=0, keepdims=True)
    pe_norm = _nan_to_zero(pe / col_max)                                  # (S, 2)
    row_norm = jnp.sqrt(jnp.sum(pe * pe, axis=1, keepdims=True))
    pe1 = _nan_to_zero(pe / row_norm)                                     # (S, 2)
    dots_prox = jnp.dot(pe1, pe1.T, preferred_element_type=jnp.float32,
                        precision=jax.lax.Precision.HIGHEST)              # (S, S)
    return pe_norm, pe_norm.T, dots_prox


def _geometric_hashing_math(fm, prox, petT, pix_x, pix_y, col_iota):
    """One batch element, one row tile of pixels.

    fm, prox : (TSr, S)    petT : (2, S)    pix_x/pix_y : (TSr, 1)    col_iota : (1, S) int32
    Returns (px_out, py_out), each (TSr, 1) float32.
    """
    S = prox.shape[1]
    px_row = petT[0:1, :]                                                 # (1, S)
    py_row = petT[1:2, :]
    neg_inf = jnp.float32(-jnp.inf)

    # ---- performKeypointDetection: top-3 over candidates (lane axis), first-index tie-break ----
    work = fm * prox                                                      # (TSr, S)
    kps = []
    for m in range(GEOMETRIC_HASHING_NUM_KEYPOINTS):
        row_max = jnp.max(work, axis=1, keepdims=True)                    # (TSr, 1)  XLU
        first_idx = jnp.min(jnp.where(work == row_max, col_iota, S),
                            axis=1, keepdims=True)                        # (TSr, 1)  XLU
        mask = col_iota == first_idx                                      # (TSr, S), reused 3x
        # Exact f32 "gather": exactly one True per row -> max-select copies the coordinate
        # bit-for-bit (no MXU push traffic, no bf16/emulation rounding).
        kx = jnp.max(jnp.where(mask, px_row, neg_inf), axis=1, keepdims=True)   # (TSr, 1)
        ky = jnp.max(jnp.where(mask, py_row, neg_inf), axis=1, keepdims=True)
        kps.append((kx, ky))
        if m + 1 < GEOMETRIC_HASHING_NUM_KEYPOINTS:
            work = jnp.where(mask, neg_inf, work)

    # ---- performGeometricHashingHardcoded ----
    def keypoint_swap(kps, a_idx, b_idx, axis):
        # Faithful to keypointSwap: the gather index (0/1) always selects from keypoints 0 and 1
        # of the *current* keypoint tensor (not from A/B themselves).
        cond = kps[a_idx][axis] > kps[b_idx][axis]                        # (TSr, 1) bool
        k0x, k0y = kps[0]
        k1x, k1y = kps[1]
        new = list(kps)
        new[a_idx] = (jnp.where(cond, k1x, k0x), jnp.where(cond, k1y, k0y))
        new[b_idx] = (jnp.where(cond, k0x, k1x), jnp.where(cond, k0y, k1y))
        return new

    kps = keypoint_swap(kps, 2, 1, yAxis)
    kps = keypoint_swap(kps, 2, 0, yAxis)
    kps = keypoint_swap(kps, 0, 1, xAxis)
    (k0x, k0y), (k1x, k1y), (k2x, k2y) = kps

    # translate to tri-base centre
    cx = (k0x + k1x) * 0.5
    cy = (k0y + k1y) * 0.5
    px = pix_x - cx
    py = pix_y - cy

    # rotate: phi = acos(vx/|v|) in [0, pi]  =>  cos = vx/|v|, sin = +sqrt(1 - cos^2)
    vx = k1x - k0x
    vy = k1y - k0y
    inv_vnorm = lax.rsqrt(vx * vx + vy * vy)                              # EUP slot
    c = vx * inv_vnorm
    s = jnp.sqrt(jnp.maximum(0.0, 1.0 - c * c))                           # clamp vs rounding
    px_r = c * px - s * py
    py_r = s * px + c * py

    # scale x by tri-base size, y by tri height
    px_r = px_r / (k0x - k1x)
    py_r = py_r / (k2y - k1y)

    # shear (horizontal axis, xAxis == 0): p @ [[1,0],[m,1]]^T = [px, m*px + py]
    m_shear = (k2x - (k0x + k1x) * 0.5) / (k2y - k0y)
    return px_r, m_shear * px_r + py_r


def _make_kernel(TB):
    def geohash_kernel(prox_ref, petT_ref, perow_ref, fm_ref, out_ref):
        # prox_ref : (TSr, S)        row tile of dotsProximity
        # petT_ref : (2, S)          pe_norm^T (resident, constant block index)
        # perow_ref: (TSr, 2)        pe_norm row tile (pixel coordinates of this tile)
        # fm_ref   : (TB, TSr, S)    featureMap tile
        # out_ref  : (TB, TSr, 2)
        prox = prox_ref[...]
        petT = petT_ref[...]
        pix_x = perow_ref[:, 0:1]
        pix_y = perow_ref[:, 1:2]
        S = petT.shape[1]
        # Hoisted once per grid step (JAX does not CSE broadcast_in_dim inside the batch loop).
        col_iota = lax.broadcasted_iota(jnp.int32, (1, S), 1)

        def one_batch(tb):
            fm = fm_ref[tb]                                               # (TSr, S)
            px_out, py_out = _geometric_hashing_math(fm, prox, petT, pix_x, pix_y, col_iota)
            # Two direct column stores (no sublane/lane interleave concatenate).
            out_ref[tb, :, 0:1] = px_out.astype(out_ref.dtype)
            out_ref[tb, :, 1:2] = py_out.astype(out_ref.dtype)

        if TB == 1:
            one_batch(0)
        else:
            def body(tb, carry):
                one_batch(tb)
                return carry
            # unrolled fori_loop keeps live ranges bounded (vs a bare Python loop)
            lax.fori_loop(0, TB, body, 0, unroll=True)

    return geohash_kernel


def geometric_hashing_forward(pos_embeddings, sequences, feature_map,
                              *, row_tile=None, batch_block=None):
    """Pallas implementation of GeometricHashingClass.forward (hardcoded path)."""
    del sequences  # pixelValues are only consumed by the (disabled) debug path
    feature_map = feature_map.astype(jnp.float32)
    B, S, _ = feature_map.shape
    G = numberOfGeometricDimensions

    # NOTE: at S < 128 every (S, S) op pads lanes to 128 and a fused-XLA path would win; the
    # Pallas kernel targets realistic S (hundreds+), small S is supported for testing only.
    pe_norm, pe_norm_T, prox = _precompute_batch_invariant(pos_embeddings)

    vmem_cap = _tpu_vmem_capacity_bytes()               # 64 MiB (v7x) / 128 MiB (v5e, v6e)
    vmem_budget = int(0.70 * vmem_cap)

    def footprint(tsr, tb):
        # fm double-buffer + prox double-buffer + ~4 (tsr, S) f32 temporaries + small residents.
        return 4 * S * tsr * (2 * tb + 6) + 8 * S * G * 4 + (1 << 20)

    # ---- row tile (second grid axis): bounds VMEM independently of S ----
    if row_tile is None:
        cands = [d for d in range(128, S, 128) if S % d == 0]     # lane-dense output row blocks
        if S <= 512 and footprint(S, 1) <= vmem_budget:
            row_tile = S
        else:
            fitting = [d for d in cands if d <= 512 and footprint(d, 1) <= vmem_budget]
            if fitting:
                row_tile = max(fitting)
            elif cands:
                row_tile = min(cands)
            else:
                # TODO(synk): very large S not a multiple of 128 -> masked row tiles not
                #             implemented; fall back to full rows (may exceed the VMEM budget).
                row_tile = S
    TSr = row_tile
    assert S % TSr == 0
    R = S // TSr

    # ---- batch block: only unrolled for small S (amortizes ~0.35us per grid step) ----
    if batch_block is None:
        batch_block = 1
        if S <= 256 and R == 1:
            # keep >= 2 grid steps per TensorCore (v7x: 2 TCs) whenever B permits
            tb_cap = max(1, B // 4) if B >= 4 else 1
            for d in range(1, min(8, B) + 1):
                if B % d == 0 and d <= tb_cap and footprint(TSr, d) <= vmem_budget:
                    batch_block = d
    TB = batch_block
    assert B % TB == 0
    grid = (R, B // TB)       # batch innermost -> each prox row tile is fetched only R times total

    est_vmem = footprint(TSr, TB)
    # Always set the scoped-VMEM limit (v5e defaults to only 16 MiB scoped), capped below physical.
    vmem_limit = int(min(0.9 * vmem_cap, max(est_vmem + (16 << 20), 32 << 20)))

    out = pl.pallas_call(
        _make_kernel(TB),
        out_shape=jax.ShapeDtypeStruct((B, S, G), jnp.float32),
        grid_spec=pltpu.PrefetchScalarGridSpec(
            num_scalar_prefetch=0,
            grid=grid,
            in_specs=[
                pl.BlockSpec((TSr, S), lambda r, b: (r, 0)),        # dotsProximity row tile
                pl.BlockSpec((G, S), lambda r, b: (0, 0)),          # pe_norm^T (batch-invariant)
                pl.BlockSpec((TSr, G), lambda r, b: (r, 0)),        # pe_norm row tile (pixels)
                pl.BlockSpec((TB, TSr, S), lambda r, b: (b, r, 0)),  # featureMap tile
            ],
            out_specs=pl.BlockSpec((TB, TSr, G), lambda r, b: (b, r, 0)),
        ),
        compiler_params=pltpu.CompilerParams(
            dimension_semantics=("parallel", "parallel"),
            vmem_limit_bytes=vmem_limit,
        ),
    )(prox, pe_norm_T, pe_norm, feature_map)
    return out


def geometric_hashing_ref(pos_embeddings, sequences, feature_map):
    """Pure-JAX reference mirroring the PyTorch module (torch-faithful formulas, lax.top_k)."""
    del sequences
    pe_norm, _, prox = _precompute_batch_invariant(pos_embeddings)
    fm_all = feature_map.astype(jnp.float32)

    def one_batch(fm_n):
        dots = fm_n * prox
        _, idx = jax.lax.top_k(dots, GEOMETRIC_HASHING_NUM_KEYPOINTS)     # (S, 3)
        kp = pe_norm[idx]                                                  # (S, 3, 2)

        def swap(kp, ai, bi, axis):
            cond = (kp[:, ai, axis] > kp[:, bi, axis])[:, None]
            a_new = jnp.where(cond, kp[:, 1, :], kp[:, 0, :])
            b_new = jnp.where(cond, kp[:, 0, :], kp[:, 1, :])
            kp = kp.at[:, ai, :].set(a_new)
            kp = kp.at[:, bi, :].set(b_new)
            return kp

        kp = swap(kp, 2, 1, yAxis)
        kp = swap(kp, 2, 0, yAxis)
        kp = swap(kp, 0, 1, xAxis)

        pix = pe_norm - (kp[:, 0, :] + kp[:, 1, :]) / 2.0
        v = kp[:, 1, :] - kp[:, 0, :]
        phi = jnp.arccos(v[:, xAxis] / jnp.linalg.norm(v, axis=1))
        c, s = jnp.cos(phi), jnp.sin(phi)
        px = c * pix[:, xAxis] - s * pix[:, yAxis]
        py = s * pix[:, xAxis] + c * pix[:, yAxis]
        px = px / (kp[:, 0, xAxis] - kp[:, 1, xAxis])
        py = py / (kp[:, 2, yAxis] - kp[:, 1, yAxis])
        m = (kp[:, 2, xAxis] - (kp[:, 0, xAxis] + kp[:, 1, xAxis]) / 2.0) / \
            (kp[:, 2, yAxis] - kp[:, 0, yAxis])
        py = m * px + py
        return jnp.stack([px, py], axis=1)                                 # (S, 2)

    return jax.vmap(one_batch)(fm_all)


if __name__ == "__main__":
    key = jax.random.PRNGKey(0)
    k_pos, k_fm, k_seq = jax.random.split(key, 3)

    batch_size = 2
    numberOfPatches = 4
    S = numberOfPatches * numberOfPatches          # sequenceLength = 16

    # posEmbeddings: patch-grid coordinates (offset by 1 so row norms are non-zero) plus a tiny
    # deterministic jitter so keypoint coordinates are distinct (avoids degenerate 0-divisions).
    idx = jnp.arange(S)
    grid_xy = jnp.stack(
        [(idx % numberOfPatches).astype(jnp.float32) + 1.0,
         (idx // numberOfPatches).astype(jnp.float32) + 1.0], axis=1)      # (S, 2)
    pos_embeddings = grid_xy + jax.random.uniform(k_pos, (S, 2), dtype=jnp.float32,
                                                  minval=0.0, maxval=0.1)

    feature_map = jax.random.uniform(k_fm, (batch_size, S, S),
                                     dtype=jnp.float32, minval=0.5, maxval=1.5)
    sequences = jax.random.uniform(k_seq, (batch_size, S), dtype=jnp.float32)

    out = jax.block_until_ready(
        geometric_hashing_forward(pos_embeddings, sequences, feature_map))
    ref = jax.block_until_ready(
        geometric_hashing_ref(pos_embeddings, sequences, feature_map))

    assert out.shape == (batch_size, S, numberOfGeometricDimensions)
    np.testing.assert_allclose(np.asarray(out), np.asarray(ref),
                               rtol=2e-4, atol=2e-4, equal_nan=True)
    print("KERNEL_OK")
</pallas_src>

<mosaic_0001>
module attributes {stable_mosaic.version = 11 : i64} {
  func.func @geohash_kernel(%arg0: i32, %arg1: i32, %arg2: memref<16x16xf32, #tpu.memory_space<vmem>>, %arg3: memref<2x16xf32, #tpu.memory_space<vmem>>, %arg4: memref<16x2xf32, #tpu.memory_space<vmem>>, %arg5: memref<1x16x16xf32, #tpu.memory_space<vmem>>, %arg6: memref<1x16x2xf32, #tpu.memory_space<vmem>>) attributes {dimension_semantics = [#tpu.dimension_semantics<parallel>, #tpu.dimension_semantics<parallel>], iteration_bounds = array<i64: 1, 2>, scalar_prefetch = 0 : i64, scratch_operands = 0 : i64, tpu.core_type = #tpu.core_type<tc>, window_params = [{transform_indices = @transform_0, window_bounds = array<i64: 16, 16>}, {pipeline_mode = #tpu.pipeline_mode<synchronous>, transform_indices = @transform_1, window_bounds = array<i64: 2, 16>}, {transform_indices = @transform_2, window_bounds = array<i64: 16, 2>}, {transform_indices = @transform_3, window_bounds = array<i64: 1, 16, 16>}, {transform_indices = @transform_4, window_bounds = array<i64: 1, 16, 2>}]} {
    %c0 = arith.constant 0 : index
    %c0_0 = arith.constant 0 : index
    %0 = vector.load %arg2[%c0, %c0_0] : memref<16x16xf32, #tpu.memory_space<vmem>>, vector<16x16xf32>
    %c0_1 = arith.constant 0 : index
    %c0_2 = arith.constant 0 : index
    %1 = vector.load %arg3[%c0_1, %c0_2] : memref<2x16xf32, #tpu.memory_space<vmem>>, vector<2x16xf32>
    %c0_3 = arith.constant 0 : index
    %c0_4 = arith.constant 0 : index
    %2 = vector.load %arg4[%c0_3, %c0_4] : memref<16x2xf32, #tpu.memory_space<vmem>>, vector<16x1xf32>
    %c0_5 = arith.constant 0 : index
    %c1 = arith.constant 1 : index
    %3 = vector.load %arg4[%c0_5, %c1] : memref<16x2xf32, #tpu.memory_space<vmem>>, vector<16x1xf32>
    %4 = tpu.iota {dimensions = array<i32: 1>} : vector<1x16xi32>
    %c0_6 = arith.constant 0 : index
    %c0_7 = arith.constant 0 : index
    %c0_8 = arith.constant 0 : index
    %5 = vector.load %arg5[%c0_6, %c0_7, %c0_8] : memref<1x16x16xf32, #tpu.memory_space<vmem>>, vector<1x16x16xf32>
    %6 = vector.shape_cast %5 : vector<1x16x16xf32> to vector<16x16xf32>
    %7 = vector.extract_strided_slice %1 {offsets = [0, 0], sizes = [1, 16], strides = [1, 1]} : vector<2x16xf32> to vector<1x16xf32>
    %8 = vector.extract_strided_slice %1 {offsets = [1, 0], sizes = [1, 16], strides = [1, 1]} : vector<2x16xf32> to vector<1x16xf32>
    %9 = arith.mulf %6, %0 : vector<16x16xf32>
    %cst = arith.constant dense<0xFF800000> : vector<16xf32>
    %10 = vector.multi_reduction <maximumf>, %9, %cst [1] : vector<16x16xf32> to vector<16xf32>
    %11 = vector.shape_cast %10 : vector<16xf32> to vector<16x1xf32>
    %12 = vector.broadcast %11 : vector<16x1xf32> to vector<16x16xf32>
    %13 = arith.cmpf oeq, %9, %12 : vector<16x16xf32>
    %c16_i32 = arith.constant 16 : i32
    %14 = vector.shape_cast %4 : vector<1x16xi32> to vector<1x16xi32>
    %15 = vector.broadcast %14 : vector<1x16xi32> to vector<16x16xi32>
    %16 = vector.broadcast %c16_i32 : i32 to vector<16x16xi32>
    %17 = arith.select %13, %15, %16 : vector<16x16xi1>, vector<16x16xi32>
    %cst_9 = arith.constant dense<2147483647> : vector<16xi32>
    %18 = vector.multi_reduction <minsi>, %17, %cst_9 [1] : vector<16x16xi32> to vector<16xi32>
    %19 = vector.shape_cast %18 : vector<16xi32> to vector<16x1xi32>
    %20 = vector.broadcast %4 : vector<1x16xi32> to vector<16x16xi32>
    %21 = vector.broadcast %19 : vector<16x1xi32> to vector<16x16xi32>
    %22 = arith.cmpi eq, %20, %21 : vector<16x16xi32>
    %cst_10 = arith.constant 0xFF800000 : f32
    %23 = vector.shape_cast %7 : vector<1x16xf32> to vector<1x16xf32>
    %24 = vector.broadcast %23 : vector<1x16xf32> to vector<16x16xf32>
    %25 = vector.broadcast %cst_10 : f32 to vector<16x16xf32>
    %26 = arith.select %22, %24, %25 : vector<16x16xi1>, vector<16x16xf32>
    %cst_11 = arith.constant dense<0xFF800000> : vector<16xf32>
    %27 = vector.multi_reduction <maximumf>, %26, %cst_11 [1] : vector<16x16xf32> to vector<16xf32>
    %28 = vector.shape_cast %27 : vector<16xf32> to vector<16x1xf32>
    %cst_12 = arith.constant 0xFF800000 : f32
    %29 = vector.shape_cast %8 : vector<1x16xf32> to vector<1x16xf32>
    %30 = vector.broadcast %29 : vector<1x16xf32> to vector<16x16xf32>
    %31 = vector.broadcast %cst_12 : f32 to vector<16x16xf32>
    %32 = arith.select %22, %30, %31 : vector<16x16xi1>, vector<16x16xf32>
    %cst_13 = arith.constant dense<0xFF800000> : vector<16xf32>
    %33 = vector.multi_reduction <maximumf>, %32, %cst_13 [1] : vector<16x16xf32> to vector<16xf32>
    %34 = vector.shape_cast %33 : vector<16xf32> to vector<16x1xf32>
    %cst_14 = arith.constant 0xFF800000 : f32
    %35 = vector.broadcast %cst_14 : f32 to vector<16x16xf32>
    %36 = arith.select %22, %35, %9 : vector<16x16xi1>, vector<16x16xf32>
    %cst_15 = arith.constant dense<0xFF800000> : vector<16xf32>
    %37 = vector.multi_reduction <maximumf>, %36, %cst_15 [1] : vector<16x16xf32> to vector<16xf32>
    %38 = vector.shape_cast %37 : vector<16xf32> to vector<16x1xf32>
    %39 = vector.broadcast %38 : vector<16x1xf32> to vector<16x16xf32>
    %40 = arith.cmpf oeq, %36, %39 : vector<16x16xf32>
    %c16_i32_16 = arith.constant 16 : i32
    %41 = vector.shape_cast %4 : vector<1x16xi32> to vector<1x16xi32>
    %42 = vector.broadcast %41 : vector<1x16xi32> to vector<16x16xi32>
    %43 = vector.broadcast %c16_i32_16 : i32 to vector<16x16xi32>
    %44 = arith.select %40, %42, %43 : vector<16x16xi1>, vector<16x16xi32>
    %cst_17 = arith.constant dense<2147483647> : vector<16xi32>
    %45 = vector.multi_reduction <minsi>, %44, %cst_17 [1] : vector<16x16xi32> to vector<16xi32>
    %46 = vector.shape_cast %45 : vector<16xi32> to vector<16x1xi32>
    %47 = vector.broadcast %4 : vector<1x16xi32> to vector<16x16xi32>
    %48 = vector.broadcast %46 : vector<16x1xi32> to vector<16x16xi32>
    %49 = arith.cmpi eq, %47, %48 : vector<16x16xi32>
    %cst_18 = arith.constant 0xFF800000 : f32
    %50 = vector.shape_cast %7 : vector<1x16xf32> to vector<1x16xf32>
    %51 = vector.broadcast %50 : vector<1x16xf32> to vector<16x16xf32>
    %52 = vector.broadcast %cst_18 : f32 to vector<16x16xf32>
    %53 = arith.select %49, %51, %52 : vector<16x16xi1>, vector<16x16xf32>
    %cst_19 = arith.constant dense<0xFF800000> : vector<16xf32>
    %54 = vector.multi_reduction <maximumf>, %53, %cst_19 [1] : vector<16x16xf32> to vector<16xf32>
    %55 = vector.shape_cast %54 : vector<16xf32> to vector<16x1xf32>
    %cst_20 = arith.constant 0xFF800000 : f32
    %56 = vector.shape_cast %8 : vector<1x16xf32> to vector<1x16xf32>
    %57 = vector.broadcast %56 : vector<1x16xf32> to vector<16x16xf32>
    %58 = vector.broadcast %cst_20 : f32 to vector<16x16xf32>
    %59 = arith.select %49, %57, %58 : vector<16x16xi1>, vector<16x16xf32>
    %cst_21 = arith.constant dense<0xFF800000> : vector<16xf32>
    %60 = vector.multi_reduction <maximumf>, %59, %cst_21 [1] : vector<16x16xf32> to vector<16xf32>
    %61 = vector.shape_cast %60 : vector<16xf32> to vector<16x1xf32>
    %cst_22 = arith.constant 0xFF800000 : f32
    %62 = vector.broadcast %cst_22 : f32 to vector<16x16xf32>
    %63 = arith.select %49, %62, %36 : vector<16x16xi1>, vector<16x16xf32>
    %cst_23 = arith.constant dense<0xFF800000> : vector<16xf32>
    %64 = vector.multi_reduction <maximumf>, %63, %cst_23 [1] : vector<16x16xf32> to vector<16xf32>
    %65 = vector.shape_cast %64 : vector<16xf32> to vector<16x1xf32>
    %66 = vector.broadcast %65 : vector<16x1xf32> to vector<16x16xf32>
    %67 = arith.cmpf oeq, %63, %66 : vector<16x16xf32>
    %c16_i32_24 = arith.constant 16 : i32
    %68 = vector.shape_cast %4 : vector<1x16xi32> to vector<1x16xi32>
    %69 = vector.broadcast %68 : vector<1x16xi32> to vector<16x16xi32>
    %70 = vector.broadcast %c16_i32_24 : i32 to vector<16x16xi32>
    %71 = arith.select %67, %69, %70 : vector<16x16xi1>, vector<16x16xi32>
    %cst_25 = arith.constant dense<2147483647> : vector<16xi32>
    %72 = vector.multi_reduction <minsi>, %71, %cst_25 [1] : vector<16x16xi32> to vector<16xi32>
    %73 = vector.shape_cast %72 : vector<16xi32> to vector<16x1xi32>
    %74 = vector.broadcast %4 : vector<1x16xi32> to vector<16x16xi32>
    %75 = vector.broadcast %73 : vector<16x1xi32> to vector<16x16xi32>
    %76 = arith.cmpi eq, %74, %75 : vector<16x16xi32>
    %cst_26 = arith.constant 0xFF800000 : f32
    %77 = vector.shape_cast %8 : vector<1x16xf32> to vector<1x16xf32>
    %78 = vector.broadcast %77 : vector<1x16xf32> to vector<16x16xf32>
    %79 = vector.broadcast %cst_26 : f32 to vector<16x16xf32>
    %80 = arith.select %76, %78, %79 : vector<16x16xi1>, vector<16x16xf32>
    %cst_27 = arith.constant dense<0xFF800000> : vector<16xf32>
    %81 = vector.multi_reduction <maximumf>, %80, %cst_27 [1] : vector<16x16xf32> to vector<16xf32>
    %82 = vector.shape_cast %81 : vector<16xf32> to vector<16x1xf32>
    %83 = arith.cmpf ogt, %82, %61 : vector<16x1xf32>
    %84 = arith.select %83, %61, %34 : vector<16x1xi1>, vector<16x1xf32>
    %85 = arith.select %83, %28, %55 : vector<16x1xi1>, vector<16x1xf32>
    %86 = arith.select %83, %34, %61 : vector<16x1xi1>, vector<16x1xf32>
    %87 = arith.cmpf ogt, %84, %34 : vector<16x1xf32>
    %88 = arith.select %87, %85, %28 : vector<16x1xi1>, vector<16x1xf32>
    %89 = arith.select %87, %86, %34 : vector<16x1xi1>, vector<16x1xf32>
    %90 = arith.select %87, %28, %85 : vector<16x1xi1>, vector<16x1xf32>
    %91 = arith.select %87, %34, %86 : vector<16x1xi1>, vector<16x1xf32>
    %92 = arith.cmpf ogt, %90, %85 : vector<16x1xf32>
    %93 = arith.select %92, %85, %90 : vector<16x1xi1>, vector<16x1xf32>
    %94 = arith.select %92, %86, %91 : vector<16x1xi1>, vector<16x1xf32>
    %95 = arith.select %92, %90, %85 : vector<16x1xi1>, vector<16x1xf32>
    %96 = arith.select %92, %91, %86 : vector<16x1xi1>, vector<16x1xf32>
    %97 = arith.addf %93, %95 : vector<16x1xf32>
    %cst_28 = arith.constant 5.000000e-01 : f32
    %98 = vector.broadcast %cst_28 : f32 to vector<16x1xf32>
    %99 = arith.mulf %97, %98 : vector<16x1xf32>
    %100 = arith.addf %94, %96 : vector<16x1xf32>
    %cst_29 = arith.constant 5.000000e-01 : f32
    %101 = vector.broadcast %cst_29 : f32 to vector<16x1xf32>
    %102 = arith.mulf %100, %101 : vector<16x1xf32>
    %103 = arith.subf %2, %99 : vector<16x1xf32>
    %104 = arith.subf %3, %102 : vector<16x1xf32>
    %105 = arith.subf %95, %93 : vector<16x1xf32>
    %106 = arith.subf %96, %94 : vector<16x1xf32>
    %107 = arith.mulf %105, %105 : vector<16x1xf32>
    %108 = arith.mulf %106, %106 : vector<16x1xf32>
    %109 = arith.addf %107, %108 : vector<16x1xf32>
    %110 = math.rsqrt %109 : vector<16x1xf32>
    %111 = arith.mulf %105, %110 : vector<16x1xf32>
    %112 = arith.mulf %111, %111 : vector<16x1xf32>
    %cst_30 = arith.constant 1.000000e+00 : f32
    %113 = vector.broadcast %cst_30 : f32 to vector<16x1xf32>
    %114 = arith.subf %113, %112 : vector<16x1xf32>
    %cst_31 = arith.constant 0.000000e+00 : f32
    %115 = vector.broadcast %cst_31 : f32 to vector<16x1xf32>
    %116 = arith.maximumf %115, %114 : vector<16x1xf32>
    %117 = math.sqrt %116 : vector<16x1xf32>
    %118 = arith.mulf %111, %103 : vector<16x1xf32>
    %119 = arith.mulf %117, %104 : vector<16x1xf32>
    %120 = arith.subf %118, %119 : vector<16x1xf32>
    %121 = arith.mulf %117, %103 : vector<16x1xf32>
    %122 = arith.mulf %111, %104 : vector<16x1xf32>
    %123 = arith.addf %121, %122 : vector<16x1xf32>
    %124 = arith.subf %93, %95 : vector<16x1xf32>
    %125 = arith.divf %120, %124 : vector<16x1xf32>
    %126 = arith.subf %89, %96 : vector<16x1xf32>
    %127 = arith.divf %123, %126 : vector<16x1xf32>
    %128 = arith.addf %93, %95 : vector<16x1xf32>
    %cst_32 = arith.constant 5.000000e-01 : f32
    %129 = vector.broadcast %cst_32 : f32 to vector<16x1xf32>
    %130 = arith.mulf %128, %129 : vector<16x1xf32>
    %131 = arith.subf %88, %130 : vector<16x1xf32>
    %132 = arith.subf %89, %94 : vector<16x1xf32>
    %133 = arith.divf %131, %132 : vector<16x1xf32>
    %134 = arith.mulf %133, %125 : vector<16x1xf32>
    %135 = arith.addf %134, %127 : vector<16x1xf32>
    %c0_33 = arith.constant 0 : index
    %c0_34 = arith.constant 0 : index
    %c0_35 = arith.constant 0 : index
    %136 = vector.load %arg6[%c0_33, %c0_34, %c0_35] : memref<1x16x2xf32, #tpu.memory_space<vmem>>, vector<1x16x1xf32>
    %137 = vector.shape_cast %136 : vector<1x16x1xf32> to vector<16x1xf32>
    %138 = vector.shape_cast %125 : vector<16x1xf32> to vector<1x16x1xf32>
    tpu.vector_store %arg6[%c0_33, %c0_34, %c0_35], %138 {strides = array<i32>} : memref<1x16x2xf32, #tpu.memory_space<vmem>>, vector<1x16x1xf32>,
    %c0_36 = arith.constant 0 : index
    %c0_37 = arith.constant 0 : index
    %c1_38 = arith.constant 1 : index
    %139 = vector.load %arg6[%c0_36, %c0_37, %c1_38] : memref<1x16x2xf32, #tpu.memory_space<vmem>>, vector<1x16x1xf32>
    %140 = vector.shape_cast %139 : vector<1x16x1xf32> to vector<16x1xf32>
    %141 = vector.shape_cast %135 : vector<16x1xf32> to vector<1x16x1xf32>
    tpu.vector_store %arg6[%c0_36, %c0_37, %c1_38], %141 {strides = array<i32>} : memref<1x16x2xf32, #tpu.memory_space<vmem>>, vector<1x16x1xf32>,
    return
  }
  func.func @transform_0(%arg0: i32, %arg1: i32) -> (i32, i32) {
    %c0_i32 = arith.constant 0 : i32
    %c0_i32_0 = arith.constant 0 : i32
    return %arg0, %c0_i32 : i32, i32
  }
  func.func @transform_1(%arg0: i32, %arg1: i32) -> (i32, i32) {
    %c0_i32 = arith.constant 0 : i32
    %c0_i32_0 = arith.constant 0 : i32
    %c0_i32_1 = arith.constant 0 : i32
    return %c0_i32, %c0_i32_0 : i32, i32
  }
  func.func @transform_2(%arg0: i32, %arg1: i32) -> (i32, i32) {
    %c0_i32 = arith.constant 0 : i32
    %c0_i32_0 = arith.constant 0 : i32
    return %arg0, %c0_i32 : i32, i32
  }
  func.func @transform_3(%arg0: i32, %arg1: i32) -> (i32, i32, i32) {
    %c0_i32 = arith.constant 0 : i32
    %c0_i32_0 = arith.constant 0 : i32
    return %arg1, %arg0, %c0_i32 : i32, i32, i32
  }
  func.func @transform_4(%arg0: i32, %arg1: i32) -> (i32, i32, i32) {
    %c0_i32 = arith.constant 0 : i32
    %c0_i32_0 = arith.constant 0 : i32
    return %arg1, %arg0, %c0_i32 : i32, i32, i32
  }
}

</mosaic_0001>

<llo_original>
// kernel: tpu_custom_call.1
$region0: #{tpu_custom_call.1}
  #allocation0 [shape = 'u32[]', space=smem, size = 0x4, offset = 0x4, fixed_abs, tag = 'smem constant byte address 0x4 - core index']
  #allocation1 [shape = 'u32[144,128]{1,0:T(1,128)}', space=vmem, size = 0x12000, scoped, tag = 'internal scratch']
  %s0 = inlined_call_operand.vmem [shape: f32[16,16], index: 0, kind: input, shape index: {}]
  %s1 = inlined_call_operand.vmem [shape: f32[2,16], index: 1, kind: input, shape index: {}]
  %s2 = inlined_call_operand.vmem [shape: f32[16,2], index: 2, kind: input, shape index: {}]
  %s3 = inlined_call_operand.hbm [shape: f32[2,16,16], index: 3, kind: input, shape index: {}]
  %s4 = inlined_call_operand.vmem [shape: f32[2,16,2], index: 4, kind: output, shape index: {}]
  %s5 = sld [smem:[#allocation0]]
  $region53: #{tpu_custom_call.1} parent=0
    _
  %s7 = ssub.s32 1, %s5
  %s8 = scalar_select 0, %s7, %s5
  $region1: #{tpu_custom_call.1} parent=0
    #allocation2 [shape = 'u8[16384]{0}', space=vmem, size = 0x4000, scoped, tag = 'input window, operand 3']
    #allocation3 [shape = 's32[2]{0}', space=sflag, size = 0x8, scoped, tag = 'scoped memory for tpu_custom_call.1']
    %9 = vsyncpa [#allocation3], 0
    %s10 = scalar_lea.sflag [#allocation3], 1
    %11 = vsyncpa %s10, 0
    loop: start=0, step=1, limit=4
    $region2: #{tpu_custom_call.1} parent=1 // loop_pre_header
      _
    $region3: #{tpu_custom_call.1} parent=1 // loop_header
      %s13 = sphi 0, %s17
      %p14 = scmp.ge.s32.totalorder %s13, 4
      %s20 = sphi 0, %s32
      %s21 = sphi 0, %s28
      %s22 = sphi 0, %s20
      %s23 = sphi 0, %s21
      %s24 = sphi 0, %s22
      %s25 = sphi 0, %s23
      %s35 = sphi 0, %s37
      %s38 = sphi 0, %s35
      %s39 = sphi 0, %s38
      %s55 = sphi 0, %s39
      %s59 = sphi 0, %s59
      %s61 = sphi 0, %s59
      %s62 = sphi 0, %s61
      %s76 = sphi 0, %s62
      %s82 = sphi 0, %s84
      %s85 = sphi 0, %s82
      %s86 = sphi 0, %s85
      %s102 = sphi 0, %s86
      %s110 = sphi 0, %s112
      %s113 = sphi 0, %s110
      %s114 = sphi 0, %s113
      %s130 = sphi 0, %s114
      %s138 = sphi 0, %s140
      %s141 = sphi 0, %s138
      %s142 = sphi 0, %s141
      %s158 = sphi 0, %s142
    $region4: #{tpu_custom_call.1} parent=1 // loop_header_branch
      %16 = sbr.rel (%p14) target = $region8
    $region5: #{tpu_custom_call.1} parent=1 // loop_body
      %s18 = ssub.s32 %s13, 1
      %s19 = ssub.s32 %s13, 2
      %s26 = sadd.s32 1, %s21
      %p27 = scmp.ge.s32.totalorder %s26, 2
      %s28 = scalar_select %p27, 0, %s26
      %s29 = sadd.s32 1, %s20
      %s30 = scalar_select %p27, %s29, %s20
      %p31 = scmp.ge.s32.totalorder %s30, 1
      %s32 = scalar_select %p31, 0, %s30
      %s33 = ssub.s32 %s20, %s32
      %p34 = scmp.eq.s32.totalorder %s33, 0
      %s36 = sadd.s32 %s35, 1
      %s37 = scalar_select %p34, %s35, %s36
      %p40 = pneg %p34
      %p41 = scmp.eq.s32.totalorder %s13, 1
      %p42 = por %p40, %p41
      %p43 = scmp.ne.s32.totalorder %s35, %s38
      %p44 = scmp.eq.s32.totalorder %s13, 0
      %p45 = por %p43, %p44
      %p46 = scmp.ne.s32.totalorder %s35, %s38
      %p47 = scmp.eq.s32.totalorder %s18, 1
      %p48 = por %p46, %p47
      %p49 = scmp.ne.s32.totalorder %s38, %s39
      %p50 = scmp.eq.s32.totalorder %s18, 0
      %p51 = por %p49, %p50
      %p52 = scmp.ne.s32.totalorder %s38, %s39
      %p53 = scmp.eq.s32.totalorder %s19, 1
      %p54 = por %p52, %p53
      %p56 = scmp.ne.s32.totalorder %s39, %s55
      %p57 = scmp.eq.s32.totalorder %s19, 0
      %p58 = por %p56, %p57
      %s60 = sadd.s32 %s59, 1
      %p63 = scmp.eq.s32.totalorder %s13, 1
      %p64 = scmp.ne.s32.totalorder %s59, %s61
      %p65 = scmp.eq.s32.totalorder %s13, 0
      %p66 = por %p64, %p65
      %p67 = scmp.ne.s32.totalorder %s59, %s61
      %p68 = scmp.eq.s32.totalorder %s18, 1
      %p69 = por %p67, %p68
      %p70 = scmp.ne.s32.totalorder %s61, %s62
      %p71 = scmp.eq.s32.totalorder %s18, 0
      %p72 = por %p70, %p71
      %p73 = scmp.ne.s32.totalorder %s61, %s62
      %p74 = scmp.eq.s32.totalorder %s19, 1
      %p75 = por %p73, %p74
      %p77 = scmp.ne.s32.totalorder %s62, %s76
      %p78 = scmp.eq.s32.totalorder %s19, 0
      %p79 = por %p77, %p78
      %s80 = ssub.s32 %s20, %s32
      %p81 = scmp.eq.s32.totalorder %s80, 0
      %s83 = sadd.s32 %s82, 1
      %s84 = scalar_select %p81, %s82, %s83
      %p87 = pneg %p81
      %p88 = scmp.eq.s32.totalorder %s13, 1
      %p89 = por %p87, %p88
      %p90 = scmp.ne.s32.totalorder %s82, %s85
      %p91 = scmp.eq.s32.totalorder %s13, 0
      %p92 = por %p90, %p91
      %p93 = scmp.ne.s32.totalorder %s82, %s85
      %p94 = scmp.eq.s32.totalorder %s18, 1
      %p95 = por %p93, %p94
      %p96 = scmp.ne.s32.totalorder %s85, %s86
      %p97 = scmp.eq.s32.totalorder %s18, 0
      %p98 = por %p96, %p97
      %p99 = scmp.ne.s32.totalorder %s85, %s86
      %p100 = scmp.eq.s32.totalorder %s19, 1
      %p101 = por %p99, %p100
      %p103 = scmp.ne.s32.totalorder %s86, %s102
      %p104 = scmp.eq.s32.totalorder %s19, 0
      %p105 = por %p103, %p104
      %s106 = ssub.s32 %s21, %s28
      %s107 = ssub.s32 %s20, %s32
      %s108 = sor.u32 %s106, %s107
      %p109 = scmp.eq.s32.totalorder %s108, 0
      %s111 = sadd.s32 %s110, 1
      %s112 = scalar_select %p109, %s110, %s111
      %p115 = pneg %p109
      %p116 = scmp.eq.s32.totalorder %s13, 1
      %p117 = por %p115, %p116
      %p118 = scmp.ne.s32.totalorder %s110, %s113
      %p119 = scmp.eq.s32.totalorder %s13, 0
      %p120 = por %p118, %p119
      %p121 = scmp.ne.s32.totalorder %s110, %s113
      %p122 = scmp.eq.s32.totalorder %s18, 1
      %p123 = por %p121, %p122
      %p124 = scmp.ne.s32.totalorder %s113, %s114
      %p125 = scmp.eq.s32.totalorder %s18, 0
      %p126 = por %p124, %p125
      %p127 = scmp.ne.s32.totalorder %s113, %s114
      %p128 = scmp.eq.s32.totalorder %s19, 1
      %p129 = por %p127, %p128
      %p131 = scmp.ne.s32.totalorder %s114, %s130
      %p132 = scmp.eq.s32.totalorder %s19, 0
      %p133 = por %p131, %p132
      %s134 = ssub.s32 %s21, %s28
      %s135 = ssub.s32 %s20, %s32
      %s136 = sor.u32 %s134, %s135
      %p137 = scmp.eq.s32.totalorder %s136, 0
      %s139 = sadd.s32 %s138, 1
      %s140 = scalar_select %p137, %s138, %s139
      %p143 = pneg %p137
      %p144 = scmp.eq.s32.totalorder %s13, 1
      %p145 = por %p143, %p144
      %p146 = scmp.ne.s32.totalorder %s138, %s141
      %p147 = scmp.eq.s32.totalorder %s13, 0
      %p148 = por %p146, %p147
      %p149 = scmp.ne.s32.totalorder %s138, %s141
      %p150 = scmp.eq.s32.totalorder %s18, 1
      %p151 = por %p149, %p150
      %p152 = scmp.ne.s32.totalorder %s141, %s142
      %p153 = scmp.eq.s32.totalorder %s18, 0
      %p154 = por %p152, %p153
      %p155 = scmp.ne.s32.totalorder %s141, %s142
      %p156 = scmp.eq.s32.totalorder %s19, 1
      %p157 = por %p155, %p156
      %p159 = scmp.ne.s32.totalorder %s142, %s158
      %p160 = scmp.eq.s32.totalorder %s19, 0
      %p161 = por %p159, %p160
      %p162 = scmp.le.s32.totalorder 1, %s13
      %p163 = scmp.lt.s32.totalorder %s13, 3
      %p164 = pnand %p162, %p163
      %p165 = pneg %p164
      // Predicated region
      $region9: #{tpu_custom_call.1} parent=5 // pred_check
        _
      $region10: #{tpu_custom_call.1} parent=5 // pred_check_branch
        %167 = sbr.rel (%p164) target = $region12
      $region11: #{tpu_custom_call.1} parent=5 // pred_region
        %s168 = ssub.s32 %s13, 1
        // Predicated region
        $region13: #{tpu_custom_call.1} parent=11 // pred_check
          %p169 = pneg %p51
        $region14: #{tpu_custom_call.1} parent=11 // pred_check_branch
          %171 = sbr.rel (%p169) target = $region16
        $region15: #{tpu_custom_call.1} parent=11 // pred_region
          %s172 = smul.u32 2, %s22
          %p173 = scmp.lt.s32.totalorder %s172, 1
          %s174 = scalar_select %p173, %s172, 1
          %s175 = smul.addr %s174, 8
          %s176 = scalar_lea.vmem %s0, %s175
          %s177 = smul.u32 2, %s22
        $region16: #{tpu_custom_call.1} parent=11 // pred_fallthru
          _
        // Predicated region
        $region17: #{tpu_custom_call.1} parent=11 // pred_check
          %p178 = pneg %p72
        $region18: #{tpu_custom_call.1} parent=11 // pred_check_branch
          %180 = sbr.rel (%p178) target = $region20
        $region19: #{tpu_custom_call.1} parent=11 // pred_region
          _
        $region20: #{tpu_custom_call.1} parent=11 // pred_fallthru
          _
        // Predicated region
        $region21: #{tpu_custom_call.1} parent=11 // pred_check
          %p181 = pneg %p98
        $region22: #{tpu_custom_call.1} parent=11 // pred_check_branch
          %183 = sbr.rel (%p181) target = $region24
        $region23: #{tpu_custom_call.1} parent=11 // pred_region
          %s184 = smul.u32 2, %s22
          %p185 = scmp.lt.s32.totalorder %s184, 1
          %s186 = scalar_select %p185, %s184, 1
          %s187 = smul.addr %s186, 8
          %s188 = scalar_lea.vmem %s2, %s187
          %s189 = smul.u32 2, %s22
        $region24: #{tpu_custom_call.1} parent=11 // pred_fallthru
          _
      $region12: #{tpu_custom_call.1} parent=5 // pred_fallthru
        _
      %p190 = scmp.lt.s32.totalorder %s13, 2
      // Predicated region
      $region25: #{tpu_custom_call.1} parent=5 // pred_check
        %p191 = pneg %p190
      $region26: #{tpu_custom_call.1} parent=5 // pred_check_branch
        %193 = sbr.rel (%p191) target = $region28
      $region27: #{tpu_custom_call.1} parent=5 // pred_region
        // Predicated region
        $region29: #{tpu_custom_call.1} parent=27 // pred_check
          %p194 = pneg %p120
        $region30: #{tpu_custom_call.1} parent=27 // pred_check_branch
          %196 = sbr.rel (%p194) target = $region32
        $region31: #{tpu_custom_call.1} parent=27 // pred_region
          %s197 = sand.u32 %s110, 1
          %s198 = scalar_lea.sflag [#allocation3], %s197
          %s199 = sand.u32 %s110, 1
          %s200 = smul.addr %s199, 16
          %s201 = scalar_lea.vmem [#allocation2], %s200
          %s202 = smul.u32 2, %s20
          %s204 = ssub.s32 256, 256
          %205 = vsyncadd %s198, %s204
          %s206 = smul.addr %s21, 2
          %s207 = sadd.s32 %s202, %s206
          %s208 = smul.addr %s207, 128
          %s209 = scalar_lea.hbm %s3, %s208
          %s210 = sshll.u32 %s201, 4
          %s211 = int_to_ptr.vmem [resolvable:$true] %s210
          %216 = dma.hbm_to_vmem [thread:$0]  %s209, 256, %s211, %s198, 128, 128, 8
        $region32: #{tpu_custom_call.1} parent=27 // pred_fallthru
          _
      $region28: #{tpu_custom_call.1} parent=5 // pred_fallthru
        _
      %p217 = scmp.le.s32.totalorder 1, %s13
      %p218 = scmp.lt.s32.totalorder %s13, 3
      %p219 = pnand %p217, %p218
      %p220 = pneg %p219
      // Predicated region
      $region33: #{tpu_custom_call.1} parent=5 // pred_check
        _
      $region34: #{tpu_custom_call.1} parent=5 // pred_check_branch
        %222 = sbr.rel (%p219) target = $region36
      $region35: #{tpu_custom_call.1} parent=5 // pred_region
        %s223 = ssub.s32 %s13, 1
        %s224 = sand.u32 %s113, 1
        %s225 = scalar_lea.sflag [#allocation3], %s224
        %s226 = sand.u32 %s113, 1
        %s227 = smul.addr %s226, 16
        %s228 = scalar_lea.vmem [#allocation2], %s227
        // Predicated region
        $region37: #{tpu_custom_call.1} parent=35 // pred_check
          %p229 = pneg %p126
        $region38: #{tpu_custom_call.1} parent=35 // pred_check_branch
          %231 = sbr.rel (%p229) target = $region40
        $region39: #{tpu_custom_call.1} parent=35 // pred_region
          %232 = dma.done %s225, 256
        $region40: #{tpu_custom_call.1} parent=35 // pred_fallthru
          _
        %s233 = smul.u32 2, %s22
        %p234 = scmp.lt.s32.totalorder %s233, 1
        %s235 = scalar_select %p234, %s233, 1
        %s236 = smul.addr %s235, 8
        %s237 = scalar_lea.vmem %s0, %s236
        %p238 = pneg %p51
        %p239 = pneg %p48
        %p240 = pneg %p72
        %p241 = pneg %p69
        %s242 = smul.u32 2, %s22
        %p243 = scmp.lt.s32.totalorder %s242, 1
        %s244 = scalar_select %p243, %s242, 1
        %s245 = smul.addr %s244, 8
        %s246 = scalar_lea.vmem %s2, %s245
        %p247 = pneg %p98
        %p248 = pneg %p95
        %s249 = sand.u32 %s113, 1
        %s250 = scalar_lea.sflag [#allocation3], %s249
        %s251 = sand.u32 %s113, 1
        %s252 = smul.addr %s251, 16
        %s253 = scalar_lea.vmem [#allocation2], %s252
        %p254 = pneg %p126
        %p255 = pneg %p123
        %p256 = pneg %p154
        %p257 = pneg %p151
        %s258 = smul.u32 2, %s22
        %p259 = scmp.lt.s32.totalorder %s23, 1
        %s260 = scalar_select %p259, %s23, 1
        %p261 = scmp.lt.s32.totalorder %s258, 1
        %s262 = scalar_select %p261, %s258, 1
        %s263 = smul.addr %s260, 2
        %s264 = sadd.s32 %s262, %s263
        %s265 = smul.addr %s264, 8
        %s266 = scalar_lea.vmem %s4, %s265
        %s267 = smul.u32 2, %s22
        %p268 = scmp.lt.s32.totalorder %s267, 1
        %s269 = scalar_select %p268, %s267, 1
        %s270 = smul.addr %s269, 8
        %s271 = scalar_lea.vmem %s0, %s270
        %s272 = smul.u32 2, %s22
        %s273 = smul.u32 2, %s22
        %p274 = scmp.lt.s32.totalorder %s273, 1
        %s275 = scalar_select %p274, %s273, 1
        %s276 = smul.addr %s275, 8
        %s277 = scalar_lea.vmem %s2, %s276
        %s278 = smul.u32 2, %s22
        %s279 = smul.u32 2, %s22
        %s280 = smul.u32 2, %s22
        %p281 = scmp.lt.s32.totalorder %s23, 1
        %s282 = scalar_select %p281, %s23, 1
        %p283 = scmp.lt.s32.totalorder %s280, 1
        %s284 = scalar_select %p283, %s280, 1
        %s285 = smul.addr %s282, 2
        %s286 = sadd.s32 %s284, %s285
        %s287 = smul.addr %s286, 8
        %s288 = scalar_lea.vmem %s4, %s287
        %s289 = smul.u32 2, %s22
        %v290 = vld [vmem:[%s271] sm:$0xff]
        %v291 = vld [vmem:[%s271 + $0x8] sm:$0xff]
        %v292 = vld [vmem:[%s1] sm:$0x3]
        %v293 = vld [vmem:[%s277] sm:$0xff]
        %v294 = vld [vmem:[%s277 + $0x8] sm:$0xff]
        %v295 = vlaneseq
        %v296 = vand.u32 %v295, 127
        %v297 = vld [vmem:[%s228] sm:$0xff]
        %v298 = vld [vmem:[%s228 + $0x8] sm:$0xff]
        %v299 = vmul.f32 %v297, %v290
        %v300 = vmul.f32 %v298, %v291
        %vm301 = vcmask 130048
        %v302 = vsel %vm301, %v299, -inf
        %303 = vmax.xlane.f32.xlu0 %v302
        %v304 = vpop.xlane.xlu0 %303
        %v305 = vsel %vm301, %v300, -inf
        %306 = vmax.xlane.f32.xlu0 %v305
        %v307 = vpop.xlane.xlu0 %306
        %vm308 = vcmp.eq.f32.partialorder %v299, %v304
        %vm309 = vcmp.eq.f32.partialorder %v300, %v307
        %v310 = vsel %vm308, %v296, 16
        %v311 = vsel %vm309, %v296, 16
        %v312 = vsel %vm301, %v310, 2147483647
        %v313 = vand.u32 %v312, 65535
        %v314 = vshra.s32 %v312, 16
        %v315 = vcvt.s32.f32 %v313
        %v316 = vcvt.s32.f32 %v314
        %317 = vmin.xlane.f32.xlu0 %v316
        %v318 = vpop.xlane.xlu0 %317
        %vm319 = vcmp.eq.f32.partialorder %v316, %v318
        %v320 = vsel %vm319, %v315, inf
        %321 = vmin.xlane.f32.xlu0 %v320
        %v322 = vpop.xlane.xlu0 %321
        %v323 = vcvt.f32.s32 %v322
        %v324 = vcvt.f32.s32 %v318
        %v325 = vshll.u32 %v324, 16
        %v326 = vadd.s32 %v325, %v323
        %v327 = vsel %vm301, %v311, 2147483647
        %v328 = vand.u32 %v327, 65535
        %v329 = vshra.s32 %v327, 16
        %v330 = vcvt.s32.f32 %v328
        %v331 = vcvt.s32.f32 %v329
        %332 = vmin.xlane.f32.xlu0 %v331
        %v333 = vpop.xlane.xlu0 %332
        %vm334 = vcmp.eq.f32.partialorder %v331, %v333
        %v335 = vsel %vm334, %v330, inf
        %336 = vmin.xlane.f32.xlu0 %v335
        %v337 = vpop.xlane.xlu0 %336
        %v338 = vcvt.f32.s32 %v337
        %v339 = vcvt.f32.s32 %v333
        %v340 = vshll.u32 %v339, 16
        %v341 = vadd.s32 %v340, %v338
        %vm342 = vcmp.eq.s32.totalorder %v296, %v326
        %vm343 = vcmp.eq.s32.totalorder %v296, %v341
        %v344 = vlaneseq
        %v345 = vshrl.u32 %v344, 7
        %v346 = vsub.s32 0, %v345
        %v347 = vrot.slane %v292, %v346
        %v348 = vsel %vm342, %v347, -inf
        %v349 = vsel %vm343, %v347, -inf
        %v350 = vsel %vm301, %v348, -inf
        %351 = vmax.xlane.f32.xlu0 %v350
        %v352 = vpop.xlane.xlu0 %351
        %v353 = vsel %vm301, %v349, -inf
        %354 = vmax.xlane.f32.xlu0 %v353
        %v355 = vpop.xlane.xlu0 %354
        %v356 = vlaneseq
        %v357 = vshrl.u32 %v356, 7
        %v358 = vsub.s32 1, %v357
        %v359 = vrot.slane %v292, %v358
        %v360 = vsel %vm342, %v359, -inf
        %v361 = vsel %vm343, %v359, -inf
        %v362 = vsel %vm301, %v360, -inf
        %363 = vmax.xlane.f32.xlu0 %v362
        %v364 = vpop.xlane.xlu0 %363
        %v365 = vsel %vm301, %v361, -inf
        %366 = vmax.xlane.f32.xlu0 %v365
        %v367 = vpop.xlane.xlu0 %366
        %v368 = vsel %vm342, -inf, %v299
        %v369 = vsel %vm343, -inf, %v300
        %v370 = vsel %vm301, %v368, -inf
        %371 = vmax.xlane.f32.xlu0 %v370
        %v372 = vpop.xlane.xlu0 %371
        %v373 = vsel %vm301, %v369, -inf
        %374 = vmax.xlane.f32.xlu0 %v373
        %v375 = vpop.xlane.xlu0 %374
        %vm376 = vcmp.eq.f32.partialorder %v368, %v372
        %vm377 = vcmp.eq.f32.partialorder %v369, %v375
        %v378 = vsel %vm376, %v296, 16
        %v379 = vsel %vm377, %v296, 16
        %v380 = vsel %vm301, %v378, 2147483647
        %v381 = vand.u32 %v380, 65535
        %v382 = vshra.s32 %v380, 16
        %v383 = vcvt.s32.f32 %v381
        %v384 = vcvt.s32.f32 %v382
        %385 = vmin.xlane.f32.xlu0 %v384
        %v386 = vpop.xlane.xlu0 %385
        %vm387 = vcmp.eq.f32.partialorder %v384, %v386
        %v388 = vsel %vm387, %v383, inf
        %389 = vmin.xlane.f32.xlu0 %v388
        %v390 = vpop.xlane.xlu0 %389
        %v391 = vcvt.f32.s32 %v390
        %v392 = vcvt.f32.s32 %v386
        %v393 = vshll.u32 %v392, 16
        %v394 = vadd.s32 %v393, %v391
        %v395 = vsel %vm301, %v379, 2147483647
        %v396 = vand.u32 %v395, 65535
        %v397 = vshra.s32 %v395, 16
        %v398 = vcvt.s32.f32 %v396
        %v399 = vcvt.s32.f32 %v397
        %400 = vmin.xlane.f32.xlu0 %v399
        %v401 = vpop.xlane.xlu0 %400
        %vm402 = vcmp.eq.f32.partialorder %v399, %v401
        %v403 = vsel %vm402, %v398, inf
        %404 = vmin.xlane.f32.xlu0 %v403
        %v405 = vpop.xlane.xlu0 %404
        %v406 = vcvt.f32.s32 %v405
        %v407 = vcvt.f32.s32 %v401
        %v408 = vshll.u32 %v407, 16
        %v409 = vadd.s32 %v408, %v406
        %vm410 = vcmp.eq.s32.totalorder %v296, %v394
        %vm411 = vcmp.eq.s32.totalorder %v296, %v409
        %v412 = vsel %vm410, %v347, -inf
        %v413 = vsel %vm411, %v347, -inf
        %v414 = vsel %vm301, %v412, -inf
        %415 = vmax.xlane.f32.xlu0 %v414
        %v416 = vpop.xlane.xlu0 %415
        %v417 = vsel %vm301, %v413, -inf
        %418 = vmax.xlane.f32.xlu0 %v417
        %v419 = vpop.xlane.xlu0 %418
        %v420 = vsel %vm410, %v359, -inf
        %v421 = vsel %vm411, %v359, -inf
        %v422 = vsel %vm301, %v420, -inf
        %423 = vmax.xlane.f32.xlu0 %v422
        %v424 = vpop.xlane.xlu0 %423
        %v425 = vsel %vm301, %v421, -inf
        %426 = vmax.xlane.f32.xlu0 %v425
        %v427 = vpop.xlane.xlu0 %426
        %v428 = vsel %vm410, -inf, %v368
        %v429 = vsel %vm411, -inf, %v369
        %v430 = vsel %vm301, %v428, -inf
        %431 = vmax.xlane.f32.xlu0 %v430
        %v432 = vpop.xlane.xlu0 %431
        %v433 = vsel %vm301, %v429, -inf
        %434 = vmax.xlane.f32.xlu0 %v433
        %v435 = vpop.xlane.xlu0 %434
        %vm436 = vcmp.eq.f32.partialorder %v428, %v432
        %vm437 = vcmp.eq.f32.partialorder %v429, %v435
        %v438 = vsel %vm436, %v296, 16
        %v439 = vsel %vm437, %v296, 16
        %v440 = vsel %vm301, %v438, 2147483647
        %v441 = vand.u32 %v440, 65535
        %v442 = vshra.s32 %v440, 16
        %v443 = vcvt.s32.f32 %v441
        %v444 = vcvt.s32.f32 %v442
        %445 = vmin.xlane.f32.xlu0 %v444
        %v446 = vpop.xlane.xlu0 %445
        %vm447 = vcmp.eq.f32.partialorder %v444, %v446
        %v448 = vsel %vm447, %v443, inf
        %449 = vmin.xlane.f32.xlu0 %v448
        %v450 = vpop.xlane.xlu0 %449
        %v451 = vcvt.f32.s32 %v450
        %v452 = vcvt.f32.s32 %v446
        %v453 = vshll.u32 %v452, 16
        %v454 = vadd.s32 %v453, %v451
        %v455 = vsel %vm301, %v439, 2147483647
        %v456 = vand.u32 %v455, 65535
        %v457 = vshra.s32 %v455, 16
        %v458 = vcvt.s32.f32 %v456
        %v459 = vcvt.s32.f32 %v457
        %460 = vmin.xlane.f32.xlu0 %v459
        %v461 = vpop.xlane.xlu0 %460
        %vm462 = vcmp.eq.f32.partialorder %v459, %v461
        %v463 = vsel %vm462, %v458, inf
        %464 = vmin.xlane.f32.xlu0 %v463
        %v465 = vpop.xlane.xlu0 %464
        %v466 = vcvt.f32.s32 %v465
        %v467 = vcvt.f32.s32 %v461
        %v468 = vshll.u32 %v467, 16
        %v469 = vadd.s32 %v468, %v466
        %vm470 = vcmp.eq.s32.totalorder %v296, %v454
        %vm471 = vcmp.eq.s32.totalorder %v296, %v469
        %v472 = vsel %vm470, %v359, -inf
        %v473 = vsel %vm471, %v359, -inf
        %v474 = vsel %vm301, %v472, -inf
        %475 = vmax.xlane.f32.xlu0 %v474
        %v476 = vpop.xlane.xlu0 %475
        %v477 = vsel %vm301, %v473, -inf
        %478 = vmax.xlane.f32.xlu0 %v477
        %v479 = vpop.xlane.xlu0 %478
        %vm480 = vcmp.gt.f32.partialorder %v476, %v424
        %vm481 = vcmp.gt.f32.partialorder %v479, %v427
        %v482 = vsel %vm480, %v424, %v364
        %v483 = vsel %vm481, %v427, %v367
        %v484 = vsel %vm480, %v352, %v416
        %v485 = vsel %vm481, %v355, %v419
        %v486 = vsel %vm480, %v364, %v424
        %v487 = vsel %vm481, %v367, %v427
        %vm488 = vcmp.gt.f32.partialorder %v482, %v364
        %vm489 = vcmp.gt.f32.partialorder %v483, %v367
        %v490 = vsel %vm488, %v484, %v352
        %v491 = vsel %vm489, %v485, %v355
        %v492 = vsel %vm488, %v486, %v364
        %v493 = vsel %vm489, %v487, %v367
        %v494 = vsel %vm488, %v352, %v484
        %v495 = vsel %vm489, %v355, %v485
        %v496 = vsel %vm488, %v364, %v486
        %v497 = vsel %vm489, %v367, %v487
        %vm498 = vcmp.gt.f32.partialorder %v494, %v484
        %vm499 = vcmp.gt.f32.partialorder %v495, %v485
        %v500 = vsel %vm498, %v484, %v494
        %v501 = vsel %vm499, %v485, %v495
        %v502 = vsel %vm498, %v486, %v496
        %v503 = vsel %vm499, %v487, %v497
        %v504 = vsel %vm498, %v494, %v484
        %v505 = vsel %vm499, %v495, %v485
        %v506 = vsel %vm498, %v496, %v486
        %v507 = vsel %vm499, %v497, %v487
        %v508 = vadd.f32 %v500, %v504
        %v509 = vadd.f32 %v501, %v505
        %v510 = vmul.f32 %v508, 0.5
        %v511 = vmul.f32 %v509, 0.5
        %v512 = vadd.f32 %v502, %v506
        %v513 = vadd.f32 %v503, %v507
        %v514 = vmul.f32 %v512, 0.5
        %v515 = vmul.f32 %v513, 0.5
        %v516 = vsub.f32 %v293, %v510
        %v517 = vsub.f32 %v294, %v511
        %v518 = vsub.f32 %v293, %v514
        %v519 = vsub.f32 %v294, %v515
        %v520 = vsub.f32 %v504, %v500
        %v521 = vsub.f32 %v505, %v501
        %v522 = vsub.f32 %v506, %v502
        %v523 = vsub.f32 %v507, %v503
        %v524 = vmul.f32 %v520, %v520
        %v525 = vmul.f32 %v521, %v521
        %v526 = vmul.f32 %v522, %v522
        %v527 = vmul.f32 %v523, %v523
        %v528 = vadd.f32 %v524, %v526
        %v529 = vadd.f32 %v525, %v527
        %v530 = vrsqrt.pop %v528
        %v531 = vrsqrt.pop %v529
        %v532 = vmul.f32 %v520, %v530
        %v533 = vmul.f32 %v521, %v531
        %v534 = vmul.f32 %v532, %v532
        %v535 = vmul.f32 %v533, %v533
        %v536 = vsub.f32 1.0, %v534
        %v537 = vsub.f32 1.0, %v535
        %v538 = vmax.f32 %v536, 0.0
        %v539 = vmax.f32 %v537, 0.0
        %v540 = vrsqrt.pop %v538
        %v541 = vmul.f32 %v538, %v540
        %vm542 = vcmp.eq.f32.partialorder %v538, inf
        %v543 = vsel %vm542, %v538, %v541
        %vm544 = vcmp.eq.f32.partialorder %v538, 0.0
        %v545 = vand.u32 %v538, 2147483648
        %v546 = vsel %vm544, %v545, %v543
        %v547 = vrsqrt.pop %v539
        %v548 = vmul.f32 %v539, %v547
        %vm549 = vcmp.eq.f32.partialorder %v539, inf
        %v550 = vsel %vm549, %v539, %v548
        %vm551 = vcmp.eq.f32.partialorder %v539, 0.0
        %v552 = vand.u32 %v539, 2147483648
        %v553 = vsel %vm551, %v552, %v550
        %v554 = vmul.f32 %v532, %v516
        %v555 = vmul.f32 %v533, %v517
        %v556 = vmul.f32 %v546, %v518
        %v557 = vmul.f32 %v553, %v519
        %560 = vrot.lane.b32.xlu0 %v556, 127
        %v561 = vpop.permute.xlu0 %560
        %562 = vrot.lane.b32.xlu0 %v557, 127
        %v563 = vpop.permute.xlu0 %562
        %v566 = vsub.f32 %v554, %v561
        %v567 = vsub.f32 %v555, %v563
        %v568 = vmul.f32 %v546, %v516
        %v569 = vmul.f32 %v553, %v517
        %v570 = vmul.f32 %v532, %v518
        %v571 = vmul.f32 %v533, %v519
        %574 = vrot.lane.b32.xlu0 %v570, 127
        %v575 = vpop.permute.xlu0 %574
        %576 = vrot.lane.b32.xlu0 %v571, 127
        %v577 = vpop.permute.xlu0 %576
        %v580 = vadd.f32 %v568, %v575
        %v581 = vadd.f32 %v569, %v577
        %v582 = vsub.f32 %v500, %v504
        %v583 = vsub.f32 %v501, %v505
        %v584 = vrcp.pop %v582
        %v585 = vmul.f32 %v566, %v584
        %v586 = vrcp.pop %v583
        %v587 = vmul.f32 %v567, %v586
        %v588 = vsub.f32 %v492, %v506
        %v589 = vsub.f32 %v493, %v507
        %v590 = vrcp.pop %v588
        %v591 = vmul.f32 %v580, %v590
        %v592 = vrcp.pop %v589
        %v593 = vmul.f32 %v581, %v592
        %v594 = vsub.f32 %v490, %v510
        %v595 = vsub.f32 %v491, %v511
        %v596 = vsub.f32 %v492, %v502
        %v597 = vsub.f32 %v493, %v503
        %v598 = vrcp.pop %v596
        %v599 = vmul.f32 %v594, %v598
        %v600 = vrcp.pop %v597
        %v601 = vmul.f32 %v595, %v600
        %v602 = vmul.f32 %v599, %v585
        %v603 = vmul.f32 %v601, %v587
        %v604 = vadd.f32 %v602, %v591
        %v605 = vadd.f32 %v603, %v593
        %vm606 = vcmask 7168
        %607 = vst.msk [vmem:[%s288] sm:$0xff] %vm606, %v585
        %608 = vst.msk [vmem:[%s288 + $0x8] sm:$0xff] %vm606, %v587
        %611 = vrot.lane.b32.xlu0 %v604, 1
        %v612 = vpop.permute.xlu0 %611
        %613 = vrot.lane.b32.xlu0 %v605, 1
        %v614 = vpop.permute.xlu0 %613
        %vm617 = vcmask 15368
        %618 = vst.msk [vmem:[%s288] sm:$0xff] %vm617, %v612
        %619 = vst.msk [vmem:[%s288 + $0x8] sm:$0xff] %vm617, %v614
        %s620 = smul.u32 2, %s22
        %p621 = scmp.lt.s32.totalorder %s23, 1
        %s622 = scalar_select %p621, %s23, 1
        %p623 = scmp.lt.s32.totalorder %s620, 1
        %s624 = scalar_select %p623, %s620, 1
        %s625 = smul.addr %s622, 2
        %s626 = sadd.s32 %s624, %s625
        %s627 = smul.addr %s626, 8
        %s628 = scalar_lea.vmem %s4, %s627
        // Predicated region
        $region41: #{tpu_custom_call.1} parent=35 // pred_check
          %p629 = pneg %p151
        $region42: #{tpu_custom_call.1} parent=35 // pred_check_branch
          %631 = sbr.rel (%p629) target = $region44
        $region43: #{tpu_custom_call.1} parent=35 // pred_region
          %s632 = smul.u32 2, %s22
        $region44: #{tpu_custom_call.1} parent=35 // pred_fallthru
          _
      $region36: #{tpu_custom_call.1} parent=5 // pred_fallthru
        _
      %p633 = scmp.le.s32.totalorder 2, %s13
      // Predicated region
      $region45: #{tpu_custom_call.1} parent=5 // pred_check
        %p634 = pneg %p633
      $region46: #{tpu_custom_call.1} parent=5 // pred_check_branch
        %636 = sbr.rel (%p634) target = $region48
      $region47: #{tpu_custom_call.1} parent=5 // pred_region
        %s637 = ssub.s32 %s13, 2
        // Predicated region
        $region49: #{tpu_custom_call.1} parent=47 // pred_check
          %p638 = pneg %p157
        $region50: #{tpu_custom_call.1} parent=47 // pred_check_branch
          %640 = sbr.rel (%p638) target = $region52
        $region51: #{tpu_custom_call.1} parent=47 // pred_region
          %s641 = smul.u32 2, %s24
          %p642 = scmp.lt.s32.totalorder %s25, 1
          %s643 = scalar_select %p642, %s25, 1
          %p644 = scmp.lt.s32.totalorder %s641, 1
          %s645 = scalar_select %p644, %s641, 1
          %s646 = smul.addr %s643, 2
          %s647 = sadd.s32 %s645, %s646
          %s648 = smul.addr %s647, 8
          %s649 = scalar_lea.vmem %s4, %s648
        $region52: #{tpu_custom_call.1} parent=47 // pred_fallthru
          _
      $region48: #{tpu_custom_call.1} parent=5 // pred_fallthru
        _
    $region6: #{tpu_custom_call.1} parent=1 // loop_footer
      %s17 = sadd.s32 1, %s13
    $region7: #{tpu_custom_call.1} parent=1 // loop_footer_branch
      %12 = sbr.rel target = $region3
    $region8: #{tpu_custom_call.1} parent=1 // loop_exit
      _
    %650 = vsyncpa [#allocation3], 1
    %s651 = scalar_lea.sflag [#allocation3], 1
    %652 = vsyncpa %s651, 1

</llo_original>
